<compile_context>
chip_gen: v7x
topology: tpu7x:2x2x1
jax: 0.10.0
libtpu: 0.0.40
codegen_flags: <defaults>
</compile_context>

<pallas_src>
import jax
import jax.numpy as jnp
from jax import lax
from jax.experimental import pallas as pl
from jax.experimental.pallas import tpu as pltpu

# ---- model hyper-parameters (small, consistent with the module's __init__) ----
D_MODEL = 32
NHEAD = 4
DFF = 64
SEQ = 8
BATCH = 2
HEAD_DIM = D_MODEL // NHEAD
ROWS = SEQ * BATCH               # 16, rows ordered (s, b) -- native seq-major layout
AROWS = NHEAD * ROWS             # 64, head-major rows ordered (h, s, b)
EPS = 1e-5                       # nn.LayerNorm default
SCALE = HEAD_DIM ** -0.5

# ---- constant-bundle layout: one (CONST_ROWS, CONST_W) f32 array ----
CONST_W = 2 * D_MODEL            # 64 lanes; also == DFF and == AROWS here
ROW_BQK, ROW_B1, ROW_BV, ROW_BO, ROW_B2 = 0, 1, 2, 3, 4
ROW_G1, ROW_BE1, ROW_G2, ROW_BE2 = 5, 6, 7, 8
MASK_ROW0 = 16                   # sublane-aligned start of the (AROWS, AROWS) mask
CONST_ROWS = MASK_ROW0 + AROWS   # 80


def _layernorm(x, gamma, beta):
    mean = jnp.mean(x, axis=-1, keepdims=True)
    var = jnp.mean((x - mean) ** 2, axis=-1, keepdims=True)
    return (x - mean) * lax.rsqrt(var + EPS) * gamma + beta


# ------------------------------- Pallas kernel --------------------------------
def encoder_layer_kernel(x_ref, pos_ref, wqk_ref, wv_ref, wo_ref, w1_ref, w2_ref,
                         c_ref, out_ref):
    """x_ref/pos_ref/out_ref: (S*B, D) seq-major rows.  Weights pre-transposed so
    every matmul is x @ W.  c_ref holds all bias/LN vectors + the attention mask."""
    x = x_ref[...]                               # (ROWS, D), rows = (s, b)
    qk_in = x + pos_ref[...]                     # with_pos_embed: q = k = src + pos

    # Fused Q|K projection (one (16,32)@(32,64) matmul) and V projection.
    qk = jnp.dot(qk_in, wqk_ref[...], preferred_element_type=jnp.float32) \
        + c_ref[ROW_BQK:ROW_BQK + 1, :]
    q = qk[:, :D_MODEL] * SCALE
    k = qk[:, D_MODEL:]
    v = jnp.dot(x, wv_ref[...], preferred_element_type=jnp.float32) \
        + c_ref[ROW_BV:ROW_BV + 1, :D_MODEL]

    # (ROWS, NHEAD*HEAD_DIM) -> head-major rows (NHEAD*ROWS, HEAD_DIM).
    def to_head_rows(a):
        return jnp.concatenate(
            [a[:, h * HEAD_DIM:(h + 1) * HEAD_DIM] for h in range(NHEAD)], axis=0)

    qh = to_head_rows(q)                         # (64, 8)
    kh = to_head_rows(k)
    vh = to_head_rows(v)

    # One score matmul for all heads & batches; precomputed block-diagonal mask.
    mask = c_ref[MASK_ROW0:MASK_ROW0 + AROWS, :AROWS]             # (64, 64)
    s = lax.dot_general(qh, kh, (((1,), (1,)), ((), ())),
                        preferred_element_type=jnp.float32) + mask
    s = s - jnp.max(s, axis=-1, keepdims=True)
    e = jnp.exp(s)
    attn = e * pl.reciprocal(jnp.sum(e, axis=-1, keepdims=True), approx=True)
    ctx = jnp.dot(attn, vh, preferred_element_type=jnp.float32)   # (64, 8)

    # Back to (ROWS, D): per-head row chunks become per-head lane chunks.
    attn_out = jnp.concatenate(
        [ctx[h * ROWS:(h + 1) * ROWS, :] for h in range(NHEAD)], axis=1)  # (16, 32)
    attn_out = jnp.dot(attn_out, wo_ref[...], preferred_element_type=jnp.float32) \
        + c_ref[ROW_BO:ROW_BO + 1, :D_MODEL]

    # residual + norm1   (dropout1 == identity at inference)
    x1 = _layernorm(x + attn_out,
                    c_ref[ROW_G1:ROW_G1 + 1, :D_MODEL],
                    c_ref[ROW_BE1:ROW_BE1 + 1, :D_MODEL])

    # FFN: linear2(dropout(relu(linear1(x))))
    ff = jnp.maximum(jnp.dot(x1, w1_ref[...], preferred_element_type=jnp.float32)
                     + c_ref[ROW_B1:ROW_B1 + 1, :DFF], 0.0)
    y = jnp.dot(ff, w2_ref[...], preferred_element_type=jnp.float32) \
        + c_ref[ROW_B2:ROW_B2 + 1, :D_MODEL]

    # residual + norm2   (dropout2 == identity at inference)
    x2 = _layernorm(x1 + y,
                    c_ref[ROW_G2:ROW_G2 + 1, :D_MODEL],
                    c_ref[ROW_BE2:ROW_BE2 + 1, :D_MODEL])

    out_ref[...] = x2.astype(out_ref.dtype)


# --------------------------- one-time weight packing ---------------------------
def pack_params(params):
    """Done once at init: transposes, Q|K fusion, and the bias/LN/mask constant
    bundle all live outside the per-call path."""
    assert CONST_W >= 2 * D_MODEL and CONST_W >= DFF and CONST_W >= AROWS

    c = jnp.zeros((CONST_ROWS, CONST_W), jnp.float32)
    c = c.at[ROW_BQK, :2 * D_MODEL].set(jnp.concatenate([params['bq'], params['bk']]))
    c = c.at[ROW_B1, :DFF].set(params['b1'])
    c = c.at[ROW_BV, :D_MODEL].set(params['bv'])
    c = c.at[ROW_BO, :D_MODEL].set(params['bo'])
    c = c.at[ROW_B2, :D_MODEL].set(params['b2'])
    c = c.at[ROW_G1, :D_MODEL].set(params['g1'])
    c = c.at[ROW_BE1, :D_MODEL].set(params['be1'])
    c = c.at[ROW_G2, :D_MODEL].set(params['g2'])
    c = c.at[ROW_BE2, :D_MODEL].set(params['be2'])

    # Block-diagonal additive mask for head-major rows r = h*ROWS + (s*BATCH + b):
    # a query row attends a key row iff same head and same batch element.
    r = jnp.arange(AROWS)
    h = r // ROWS
    b = (r % ROWS) % BATCH
    same = (h[:, None] == h[None, :]) & (b[:, None] == b[None, :])
    mask = jnp.where(same, 0.0, -1e30).astype(jnp.float32)
    c = c.at[MASK_ROW0:MASK_ROW0 + AROWS, :AROWS].set(mask)

    return (
        jnp.concatenate([params['wq'].T, params['wk'].T], axis=1),   # (D, 2D)
        params['wv'].T,
        params['wo'].T,
        params['w1'].T,
        params['w2'].T,
        c,
    )


# --------------------------------- wrapper -------------------------------------
_VMEM_SPEC = pl.BlockSpec(memory_space=pltpu.MemorySpace.VMEM)


def transformer_encoder_layer(src, pos, packed):
    """src, pos: (S, B, D) float32 (PyTorch seq-first). Returns (S, B, D)."""
    S, B, D = src.shape
    assert (S, B, D) == (SEQ, BATCH, D_MODEL)

    # Native seq-major rows: no transpose; the reshape is a no-copy view.
    x = src.reshape(S * B, D)
    p = pos.reshape(S * B, D)
    args = (x, p) + tuple(packed)

    out = pl.pallas_call(
        encoder_layer_kernel,
        out_shape=jax.ShapeDtypeStruct((S * B, D), src.dtype),
        in_specs=[_VMEM_SPEC] * len(args),
        out_specs=_VMEM_SPEC,
    )(*args)

    return out.reshape(S, B, D)


# --------------------------- pure-JAX reference ---------------------------------
def reference(src, pos, params):
    S, B, D = src.shape
    hd = D // NHEAD
    qk = src + pos
    q = qk @ params['wq'].T + params['bq']
    k = qk @ params['wk'].T + params['bk']
    v = src @ params['wv'].T + params['bv']

    def split(a):
        return a.reshape(S, B, NHEAD, hd).transpose(1, 2, 0, 3)  # (B, H, S, hd)

    qh, kh, vh = split(q) * (hd ** -0.5), split(k), split(v)
    s = jnp.einsum('bhqd,bhkd->bhqk', qh, kh)
    pattn = jax.nn.softmax(s, axis=-1)
    o = jnp.einsum('bhqk,bhkd->bhqd', pattn, vh)
    o = o.transpose(2, 0, 1, 3).reshape(S, B, D)
    o = o @ params['wo'].T + params['bo']
    x = _layernorm(src + o, params['g1'], params['be1'])
    ff = jax.nn.relu(x @ params['w1'].T + params['b1'])
    y = ff @ params['w2'].T + params['b2']
    return _layernorm(x + y, params['g2'], params['be2'])


# ----------------------------------- main ---------------------------------------
if __name__ == "__main__":
    key = jax.random.PRNGKey(0)
    ks = jax.random.split(key, 16)

    def init(k, shape, s=0.05):
        return jax.random.normal(k, shape, jnp.float32) * s

    params = {
        # self_attn in_proj (split into q/k/v rows) and out_proj
        'wq': init(ks[0], (D_MODEL, D_MODEL)), 'bq': init(ks[1], (D_MODEL,)),
        'wk': init(ks[2], (D_MODEL, D_MODEL)), 'bk': init(ks[3], (D_MODEL,)),
        'wv': init(ks[4], (D_MODEL, D_MODEL)), 'bv': init(ks[5], (D_MODEL,)),
        'wo': init(ks[6], (D_MODEL, D_MODEL)), 'bo': init(ks[7], (D_MODEL,)),
        # feed-forward
        'w1': init(ks[8], (DFF, D_MODEL)),  'b1': init(ks[9], (DFF,)),
        'w2': init(ks[10], (D_MODEL, DFF)), 'b2': init(ks[11], (D_MODEL,)),
        # layer norms
        'g1': jnp.ones((D_MODEL,), jnp.float32), 'be1': jnp.zeros((D_MODEL,), jnp.float32),
        'g2': jnp.ones((D_MODEL,), jnp.float32), 'be2': jnp.zeros((D_MODEL,), jnp.float32),
    }
    packed = pack_params(params)   # one-time packing, outside the per-call path

    src = jax.random.normal(ks[12], (SEQ, BATCH, D_MODEL), jnp.float32)
    pos = jax.random.normal(ks[13], (SEQ, BATCH, D_MODEL), jnp.float32)

    out = transformer_encoder_layer(src, pos, packed)
    out = jax.block_until_ready(out)

    ref = reference(src, pos, params)
    assert out.shape == (SEQ, BATCH, D_MODEL)
    # Tolerance covers the EUP approximate-reciprocal softmax denominator
    # (pl.reciprocal(approx=True)); all other math is exact f32.
    max_err = float(jnp.max(jnp.abs(out - ref)))
    if max_err > 5e-4:
        raise AssertionError(f"Pallas kernel mismatch vs reference, max |err| = {max_err}")

    print("KERNEL_OK")
</pallas_src>

<mosaic_0001>
module attributes {stable_mosaic.version = 11 : i64} {
  func.func @encoder_layer_kernel(%arg0: memref<16x32xf32, #tpu.memory_space<vmem>>, %arg1: memref<16x32xf32, #tpu.memory_space<vmem>>, %arg2: memref<32x64xf32, #tpu.memory_space<vmem>>, %arg3: memref<32x32xf32, #tpu.memory_space<vmem>>, %arg4: memref<32x32xf32, #tpu.memory_space<vmem>>, %arg5: memref<32x64xf32, #tpu.memory_space<vmem>>, %arg6: memref<64x32xf32, #tpu.memory_space<vmem>>, %arg7: memref<80x64xf32, #tpu.memory_space<vmem>>, %arg8: memref<16x32xf32, #tpu.memory_space<vmem>>) attributes {dimension_semantics = [], scalar_prefetch = 0 : i64, scratch_operands = 0 : i64, tpu.core_type = #tpu.core_type<tc>} {
    %c0 = arith.constant 0 : index
    %c0_0 = arith.constant 0 : index
    %0 = vector.load %arg0[%c0, %c0_0] : memref<16x32xf32, #tpu.memory_space<vmem>>, vector<16x32xf32>
    %c0_1 = arith.constant 0 : index
    %c0_2 = arith.constant 0 : index
    %1 = vector.load %arg1[%c0_1, %c0_2] : memref<16x32xf32, #tpu.memory_space<vmem>>, vector<16x32xf32>
    %2 = arith.addf %0, %1 : vector<16x32xf32>
    %c0_3 = arith.constant 0 : index
    %c0_4 = arith.constant 0 : index
    %3 = vector.load %arg2[%c0_3, %c0_4] : memref<32x64xf32, #tpu.memory_space<vmem>>, vector<32x64xf32>
    %cst = arith.constant dense<0.000000e+00> : vector<16x64xf32>
    %4 = tpu.matmul %2, %3, %cst {dimension_numbers = #tpu.dot_dimension_numbers<[1], [0], [0], [1], [0, 0, 1, 1], [], []>} : vector<16x32xf32>, vector<32x64xf32>, vector<16x64xf32> -> vector<16x64xf32>
    %c0_5 = arith.constant 0 : index
    %c0_6 = arith.constant 0 : index
    %5 = vector.load %arg7[%c0_5, %c0_6] : memref<80x64xf32, #tpu.memory_space<vmem>>, vector<1x64xf32>
    %6 = vector.broadcast %5 : vector<1x64xf32> to vector<16x64xf32>
    %7 = arith.addf %4, %6 : vector<16x64xf32>
    %8 = vector.extract_strided_slice %7 {offsets = [0, 0], sizes = [16, 32], strides = [1, 1]} : vector<16x64xf32> to vector<16x32xf32>
    %cst_7 = arith.constant 0.353553385 : f32
    %9 = vector.broadcast %cst_7 : f32 to vector<16x32xf32>
    %10 = arith.mulf %8, %9 : vector<16x32xf32>
    %11 = vector.extract_strided_slice %7 {offsets = [0, 32], sizes = [16, 32], strides = [1, 1]} : vector<16x64xf32> to vector<16x32xf32>
    %c0_8 = arith.constant 0 : index
    %c0_9 = arith.constant 0 : index
    %12 = vector.load %arg3[%c0_8, %c0_9] : memref<32x32xf32, #tpu.memory_space<vmem>>, vector<32x32xf32>
    %cst_10 = arith.constant dense<0.000000e+00> : vector<16x32xf32>
    %13 = tpu.matmul %0, %12, %cst_10 {dimension_numbers = #tpu.dot_dimension_numbers<[1], [0], [0], [1], [0, 0, 1, 1], [], []>} : vector<16x32xf32>, vector<32x32xf32>, vector<16x32xf32> -> vector<16x32xf32>
    %c2 = arith.constant 2 : index
    %c0_11 = arith.constant 0 : index
    %14 = vector.load %arg7[%c2, %c0_11] : memref<80x64xf32, #tpu.memory_space<vmem>>, vector<1x32xf32>
    %15 = vector.broadcast %14 : vector<1x32xf32> to vector<16x32xf32>
    %16 = arith.addf %13, %15 : vector<16x32xf32>
    %17 = vector.extract_strided_slice %10 {offsets = [0, 0], sizes = [16, 8], strides = [1, 1]} : vector<16x32xf32> to vector<16x8xf32>
    %18 = vector.extract_strided_slice %10 {offsets = [0, 8], sizes = [16, 8], strides = [1, 1]} : vector<16x32xf32> to vector<16x8xf32>
    %19 = vector.extract_strided_slice %10 {offsets = [0, 16], sizes = [16, 8], strides = [1, 1]} : vector<16x32xf32> to vector<16x8xf32>
    %20 = vector.extract_strided_slice %10 {offsets = [0, 24], sizes = [16, 8], strides = [1, 1]} : vector<16x32xf32> to vector<16x8xf32>
    %21 = tpu.concatenate %17, %18, %19, %20 in 0 : vector<16x8xf32>, vector<16x8xf32>, vector<16x8xf32>, vector<16x8xf32> -> vector<64x8xf32>
    %22 = vector.extract_strided_slice %11 {offsets = [0, 0], sizes = [16, 8], strides = [1, 1]} : vector<16x32xf32> to vector<16x8xf32>
    %23 = vector.extract_strided_slice %11 {offsets = [0, 8], sizes = [16, 8], strides = [1, 1]} : vector<16x32xf32> to vector<16x8xf32>
    %24 = vector.extract_strided_slice %11 {offsets = [0, 16], sizes = [16, 8], strides = [1, 1]} : vector<16x32xf32> to vector<16x8xf32>
    %25 = vector.extract_strided_slice %11 {offsets = [0, 24], sizes = [16, 8], strides = [1, 1]} : vector<16x32xf32> to vector<16x8xf32>
    %26 = tpu.concatenate %22, %23, %24, %25 in 0 : vector<16x8xf32>, vector<16x8xf32>, vector<16x8xf32>, vector<16x8xf32> -> vector<64x8xf32>
    %27 = vector.extract_strided_slice %16 {offsets = [0, 0], sizes = [16, 8], strides = [1, 1]} : vector<16x32xf32> to vector<16x8xf32>
    %28 = vector.extract_strided_slice %16 {offsets = [0, 8], sizes = [16, 8], strides = [1, 1]} : vector<16x32xf32> to vector<16x8xf32>
    %29 = vector.extract_strided_slice %16 {offsets = [0, 16], sizes = [16, 8], strides = [1, 1]} : vector<16x32xf32> to vector<16x8xf32>
    %30 = vector.extract_strided_slice %16 {offsets = [0, 24], sizes = [16, 8], strides = [1, 1]} : vector<16x32xf32> to vector<16x8xf32>
    %31 = tpu.concatenate %27, %28, %29, %30 in 0 : vector<16x8xf32>, vector<16x8xf32>, vector<16x8xf32>, vector<16x8xf32> -> vector<64x8xf32>
    %c16 = arith.constant 16 : index
    %c0_12 = arith.constant 0 : index
    %32 = vector.load %arg7[%c16, %c0_12] : memref<80x64xf32, #tpu.memory_space<vmem>>, vector<64x64xf32>
    %cst_13 = arith.constant dense<0.000000e+00> : vector<64x64xf32>
    %33 = tpu.matmul %21, %26, %cst_13 {dimension_numbers = #tpu.dot_dimension_numbers<[1], [1], [0], [0], [0, 0, 1, 0], [], []>} : vector<64x8xf32>, vector<64x8xf32>, vector<64x64xf32> -> vector<64x64xf32>
    %34 = arith.addf %33, %32 : vector<64x64xf32>
    %cst_14 = arith.constant dense<0xFF800000> : vector<64xf32>
    %35 = vector.multi_reduction <maximumf>, %34, %cst_14 [1] : vector<64x64xf32> to vector<64xf32>
    %36 = vector.shape_cast %35 : vector<64xf32> to vector<64x1xf32>
    %37 = vector.broadcast %36 : vector<64x1xf32> to vector<64x64xf32>
    %38 = arith.subf %34, %37 : vector<64x64xf32>
    %39 = math.exp %38 : vector<64x64xf32>
    %cst_15 = arith.constant dense<0.000000e+00> : vector<64xf32>
    %40 = vector.multi_reduction <add>, %39, %cst_15 [1] : vector<64x64xf32> to vector<64xf32>
    %41 = vector.shape_cast %40 : vector<64xf32> to vector<64x1xf32>
    %42 = tpu.reciprocal %41 {approx = true} : vector<64x1xf32> -> vector<64x1xf32>
    %43 = vector.broadcast %42 : vector<64x1xf32> to vector<64x64xf32>
    %44 = arith.mulf %39, %43 : vector<64x64xf32>
    %cst_16 = arith.constant dense<0.000000e+00> : vector<64x8xf32>
    %45 = tpu.matmul %44, %31, %cst_16 {dimension_numbers = #tpu.dot_dimension_numbers<[1], [0], [0], [1], [0, 0, 1, 1], [], []>} : vector<64x64xf32>, vector<64x8xf32>, vector<64x8xf32> -> vector<64x8xf32>
    %46 = vector.extract_strided_slice %45 {offsets = [0, 0], sizes = [16, 8], strides = [1, 1]} : vector<64x8xf32> to vector<16x8xf32>
    %47 = vector.extract_strided_slice %45 {offsets = [16, 0], sizes = [16, 8], strides = [1, 1]} : vector<64x8xf32> to vector<16x8xf32>
    %48 = vector.extract_strided_slice %45 {offsets = [32, 0], sizes = [16, 8], strides = [1, 1]} : vector<64x8xf32> to vector<16x8xf32>
    %49 = vector.extract_strided_slice %45 {offsets = [48, 0], sizes = [16, 8], strides = [1, 1]} : vector<64x8xf32> to vector<16x8xf32>
    %50 = tpu.concatenate %46, %47, %48, %49 in 1 : vector<16x8xf32>, vector<16x8xf32>, vector<16x8xf32>, vector<16x8xf32> -> vector<16x32xf32>
    %c0_17 = arith.constant 0 : index
    %c0_18 = arith.constant 0 : index
    %51 = vector.load %arg4[%c0_17, %c0_18] : memref<32x32xf32, #tpu.memory_space<vmem>>, vector<32x32xf32>
    %cst_19 = arith.constant dense<0.000000e+00> : vector<16x32xf32>
    %52 = tpu.matmul %50, %51, %cst_19 {dimension_numbers = #tpu.dot_dimension_numbers<[1], [0], [0], [1], [0, 0, 1, 1], [], []>} : vector<16x32xf32>, vector<32x32xf32>, vector<16x32xf32> -> vector<16x32xf32>
    %c3 = arith.constant 3 : index
    %c0_20 = arith.constant 0 : index
    %53 = vector.load %arg7[%c3, %c0_20] : memref<80x64xf32, #tpu.memory_space<vmem>>, vector<1x32xf32>
    %54 = vector.broadcast %53 : vector<1x32xf32> to vector<16x32xf32>
    %55 = arith.addf %52, %54 : vector<16x32xf32>
    %56 = arith.addf %0, %55 : vector<16x32xf32>
    %c5 = arith.constant 5 : index
    %c0_21 = arith.constant 0 : index
    %57 = vector.load %arg7[%c5, %c0_21] : memref<80x64xf32, #tpu.memory_space<vmem>>, vector<1x32xf32>
    %c6 = arith.constant 6 : index
    %c0_22 = arith.constant 0 : index
    %58 = vector.load %arg7[%c6, %c0_22] : memref<80x64xf32, #tpu.memory_space<vmem>>, vector<1x32xf32>
    %cst_23 = arith.constant dense<0.000000e+00> : vector<16xf32>
    %59 = vector.multi_reduction <add>, %56, %cst_23 [1] : vector<16x32xf32> to vector<16xf32>
    %60 = vector.shape_cast %59 : vector<16xf32> to vector<16x1xf32>
    %cst_24 = arith.constant 3.200000e+01 : f32
    %61 = vector.broadcast %cst_24 : f32 to vector<16x1xf32>
    %62 = arith.divf %60, %61 : vector<16x1xf32>
    %63 = vector.broadcast %62 : vector<16x1xf32> to vector<16x32xf32>
    %64 = arith.subf %56, %63 : vector<16x32xf32>
    %65 = arith.mulf %64, %64 : vector<16x32xf32>
    %cst_25 = arith.constant dense<0.000000e+00> : vector<16xf32>
    %66 = vector.multi_reduction <add>, %65, %cst_25 [1] : vector<16x32xf32> to vector<16xf32>
    %67 = vector.shape_cast %66 : vector<16xf32> to vector<16x1xf32>
    %cst_26 = arith.constant 3.200000e+01 : f32
    %68 = vector.broadcast %cst_26 : f32 to vector<16x1xf32>
    %69 = arith.divf %67, %68 : vector<16x1xf32>
    %70 = vector.broadcast %62 : vector<16x1xf32> to vector<16x32xf32>
    %71 = arith.subf %56, %70 : vector<16x32xf32>
    %cst_27 = arith.constant 9.99999974E-6 : f32
    %72 = vector.broadcast %cst_27 : f32 to vector<16x1xf32>
    %73 = arith.addf %69, %72 : vector<16x1xf32>
    %74 = math.rsqrt %73 : vector<16x1xf32>
    %75 = vector.broadcast %74 : vector<16x1xf32> to vector<16x32xf32>
    %76 = arith.mulf %71, %75 : vector<16x32xf32>
    %77 = vector.broadcast %57 : vector<1x32xf32> to vector<16x32xf32>
    %78 = arith.mulf %76, %77 : vector<16x32xf32>
    %79 = vector.broadcast %58 : vector<1x32xf32> to vector<16x32xf32>
    %80 = arith.addf %78, %79 : vector<16x32xf32>
    %c0_28 = arith.constant 0 : index
    %c0_29 = arith.constant 0 : index
    %81 = vector.load %arg5[%c0_28, %c0_29] : memref<32x64xf32, #tpu.memory_space<vmem>>, vector<32x64xf32>
    %cst_30 = arith.constant dense<0.000000e+00> : vector<16x64xf32>
    %82 = tpu.matmul %80, %81, %cst_30 {dimension_numbers = #tpu.dot_dimension_numbers<[1], [0], [0], [1], [0, 0, 1, 1], [], []>} : vector<16x32xf32>, vector<32x64xf32>, vector<16x64xf32> -> vector<16x64xf32>
    %c1 = arith.constant 1 : index
    %c0_31 = arith.constant 0 : index
    %83 = vector.load %arg7[%c1, %c0_31] : memref<80x64xf32, #tpu.memory_space<vmem>>, vector<1x64xf32>
    %84 = vector.broadcast %83 : vector<1x64xf32> to vector<16x64xf32>
    %85 = arith.addf %82, %84 : vector<16x64xf32>
    %cst_32 = arith.constant 0.000000e+00 : f32
    %86 = vector.broadcast %cst_32 : f32 to vector<16x64xf32>
    %87 = arith.maximumf %85, %86 : vector<16x64xf32>
    %c0_33 = arith.constant 0 : index
    %c0_34 = arith.constant 0 : index
    %88 = vector.load %arg6[%c0_33, %c0_34] : memref<64x32xf32, #tpu.memory_space<vmem>>, vector<64x32xf32>
    %cst_35 = arith.constant dense<0.000000e+00> : vector<16x32xf32>
    %89 = tpu.matmul %87, %88, %cst_35 {dimension_numbers = #tpu.dot_dimension_numbers<[1], [0], [0], [1], [0, 0, 1, 1], [], []>} : vector<16x64xf32>, vector<64x32xf32>, vector<16x32xf32> -> vector<16x32xf32>
    %c4 = arith.constant 4 : index
    %c0_36 = arith.constant 0 : index
    %90 = vector.load %arg7[%c4, %c0_36] : memref<80x64xf32, #tpu.memory_space<vmem>>, vector<1x32xf32>
    %91 = vector.broadcast %90 : vector<1x32xf32> to vector<16x32xf32>
    %92 = arith.addf %89, %91 : vector<16x32xf32>
    %93 = arith.addf %80, %92 : vector<16x32xf32>
    %c7 = arith.constant 7 : index
    %c0_37 = arith.constant 0 : index
    %94 = vector.load %arg7[%c7, %c0_37] : memref<80x64xf32, #tpu.memory_space<vmem>>, vector<1x32xf32>
    %c8 = arith.constant 8 : index
    %c0_38 = arith.constant 0 : index
    %95 = vector.load %arg7[%c8, %c0_38] : memref<80x64xf32, #tpu.memory_space<vmem>>, vector<1x32xf32>
    %cst_39 = arith.constant dense<0.000000e+00> : vector<16xf32>
    %96 = vector.multi_reduction <add>, %93, %cst_39 [1] : vector<16x32xf32> to vector<16xf32>
    %97 = vector.shape_cast %96 : vector<16xf32> to vector<16x1xf32>
    %cst_40 = arith.constant 3.200000e+01 : f32
    %98 = vector.broadcast %cst_40 : f32 to vector<16x1xf32>
    %99 = arith.divf %97, %98 : vector<16x1xf32>
    %100 = vector.broadcast %99 : vector<16x1xf32> to vector<16x32xf32>
    %101 = arith.subf %93, %100 : vector<16x32xf32>
    %102 = arith.mulf %101, %101 : vector<16x32xf32>
    %cst_41 = arith.constant dense<0.000000e+00> : vector<16xf32>
    %103 = vector.multi_reduction <add>, %102, %cst_41 [1] : vector<16x32xf32> to vector<16xf32>
    %104 = vector.shape_cast %103 : vector<16xf32> to vector<16x1xf32>
    %cst_42 = arith.constant 3.200000e+01 : f32
    %105 = vector.broadcast %cst_42 : f32 to vector<16x1xf32>
    %106 = arith.divf %104, %105 : vector<16x1xf32>
    %107 = vector.broadcast %99 : vector<16x1xf32> to vector<16x32xf32>
    %108 = arith.subf %93, %107 : vector<16x32xf32>
    %cst_43 = arith.constant 9.99999974E-6 : f32
    %109 = vector.broadcast %cst_43 : f32 to vector<16x1xf32>
    %110 = arith.addf %106, %109 : vector<16x1xf32>
    %111 = math.rsqrt %110 : vector<16x1xf32>
    %112 = vector.broadcast %111 : vector<16x1xf32> to vector<16x32xf32>
    %113 = arith.mulf %108, %112 : vector<16x32xf32>
    %114 = vector.broadcast %94 : vector<1x32xf32> to vector<16x32xf32>
    %115 = arith.mulf %113, %114 : vector<16x32xf32>
    %116 = vector.broadcast %95 : vector<1x32xf32> to vector<16x32xf32>
    %117 = arith.addf %115, %116 : vector<16x32xf32>
    %c0_44 = arith.constant 0 : index
    %c0_45 = arith.constant 0 : index
    %118 = vector.load %arg8[%c0_44, %c0_45] : memref<16x32xf32, #tpu.memory_space<vmem>>, vector<16x32xf32>
    tpu.vector_store %arg8[%c0_44, %c0_45], %117 {strides = array<i32>} : memref<16x32xf32, #tpu.memory_space<vmem>>, vector<16x32xf32>,
    return
  }
}

</mosaic_0001>

<llo_original>
// kernel: tpu_custom_call.1
$region0: #{tpu_custom_call.1}
  #allocation0 [shape = 'u32[]', space=smem, size = 0x4, offset = 0x4, fixed_abs, tag = 'smem constant byte address 0x4 - core index']
  #allocation1 [shape = 'u32[144,128]{1,0:T(1,128)}', space=vmem, size = 0x12000, scoped, tag = 'internal scratch']
  %s0 = inlined_call_operand.vmem [shape: f32[16,32], index: 0, kind: input, shape index: {}]
  %s1 = inlined_call_operand.vmem [shape: f32[16,32], index: 1, kind: input, shape index: {}]
  %s2 = inlined_call_operand.vmem [shape: f32[32,64], index: 2, kind: input, shape index: {}]
  %s3 = inlined_call_operand.vmem [shape: f32[32,32], index: 3, kind: input, shape index: {}]
  %s4 = inlined_call_operand.vmem [shape: f32[32,32], index: 4, kind: input, shape index: {}]
  %s5 = inlined_call_operand.vmem [shape: f32[32,64], index: 5, kind: input, shape index: {}]
  %s6 = inlined_call_operand.vmem [shape: f32[64,32], index: 6, kind: input, shape index: {}]
  %s7 = inlined_call_operand.vmem [shape: f32[80,64], index: 7, kind: input, shape index: {}]
  %s8 = inlined_call_operand.hbm [shape: f32[16,32], index: 8, kind: output, shape index: {}]
  %s9 = sld [smem:[#allocation0]]
  $region42: #{tpu_custom_call.1} parent=0
    _
  %s11 = ssub.s32 1, %s9
  %s12 = scalar_select 0, %s11, %s9
  $region1: #{tpu_custom_call.1} parent=0
    #allocation2 [shape = 'u8[8192]{0}', space=vmem, size = 0x2000, scoped, tag = 'output window, operand 0, single buffered']
    #allocation3 [shape = 's32[1]{0}', space=sflag, size = 0x4, scoped, tag = 'scoped memory for tpu_custom_call.1']
    %13 = vsyncpa [#allocation3], 0
    // Predicated region
    $region2: #{tpu_custom_call.1} parent=1 // pred_check
      _
    $region3: #{tpu_custom_call.1} parent=1 // pred_check_branch
      %15 = sbr.rel (0) target = $region5
    $region4: #{tpu_custom_call.1} parent=1 // pred_region
      _
    $region5: #{tpu_custom_call.1} parent=1 // pred_fallthru
      _
    // Predicated region
    $region6: #{tpu_custom_call.1} parent=1 // pred_check
      _
    $region7: #{tpu_custom_call.1} parent=1 // pred_check_branch
      %17 = sbr.rel (0) target = $region9
    $region8: #{tpu_custom_call.1} parent=1 // pred_region
      _
    $region9: #{tpu_custom_call.1} parent=1 // pred_fallthru
      _
    // Predicated region
    $region10: #{tpu_custom_call.1} parent=1 // pred_check
      _
    $region11: #{tpu_custom_call.1} parent=1 // pred_check_branch
      %19 = sbr.rel (0) target = $region13
    $region12: #{tpu_custom_call.1} parent=1 // pred_region
      _
    $region13: #{tpu_custom_call.1} parent=1 // pred_fallthru
      _
    // Predicated region
    $region14: #{tpu_custom_call.1} parent=1 // pred_check
      _
    $region15: #{tpu_custom_call.1} parent=1 // pred_check_branch
      %21 = sbr.rel (0) target = $region17
    $region16: #{tpu_custom_call.1} parent=1 // pred_region
      _
    $region17: #{tpu_custom_call.1} parent=1 // pred_fallthru
      _
    // Predicated region
    $region18: #{tpu_custom_call.1} parent=1 // pred_check
      _
    $region19: #{tpu_custom_call.1} parent=1 // pred_check_branch
      %23 = sbr.rel (0) target = $region21
    $region20: #{tpu_custom_call.1} parent=1 // pred_region
      _
    $region21: #{tpu_custom_call.1} parent=1 // pred_fallthru
      _
    // Predicated region
    $region22: #{tpu_custom_call.1} parent=1 // pred_check
      _
    $region23: #{tpu_custom_call.1} parent=1 // pred_check_branch
      %25 = sbr.rel (0) target = $region25
    $region24: #{tpu_custom_call.1} parent=1 // pred_region
      _
    $region25: #{tpu_custom_call.1} parent=1 // pred_fallthru
      _
    // Predicated region
    $region26: #{tpu_custom_call.1} parent=1 // pred_check
      _
    $region27: #{tpu_custom_call.1} parent=1 // pred_check_branch
      %27 = sbr.rel (0) target = $region29
    $region28: #{tpu_custom_call.1} parent=1 // pred_region
      _
    $region29: #{tpu_custom_call.1} parent=1 // pred_fallthru
      _
    // Predicated region
    $region30: #{tpu_custom_call.1} parent=1 // pred_check
      _
    $region31: #{tpu_custom_call.1} parent=1 // pred_check_branch
      %29 = sbr.rel (0) target = $region33
    $region32: #{tpu_custom_call.1} parent=1 // pred_region
      _
    $region33: #{tpu_custom_call.1} parent=1 // pred_fallthru
      _
    %v30 = vld [vmem:[%s0] sm:$0xff]
    %v31 = vld [vmem:[%s0 + $0x8] sm:$0xff]
    %v32 = vld [vmem:[%s1] sm:$0xff]
    %v33 = vld [vmem:[%s1 + $0x8] sm:$0xff]
    %v34 = vadd.f32 %v30, %v32
    %v35 = vadd.f32 %v31, %v33
    %v36 = vld [vmem:[%s2] sm:$0xff]
    %v37 = vld [vmem:[%s2 + $0x8] sm:$0xff]
    %v38 = vld [vmem:[%s2 + $0x10] sm:$0xff]
    %v39 = vld [vmem:[%s2 + $0x18] sm:$0xff]
    %v40 = vld [vmem:[%s7] sm:$0x1]
    %v41 = vlaneseq
    %v42 = vshrl.u32 %v41, 7
    %v43 = vsub.s32 0, %v42
    %v44 = vrot.slane %v40, %v43
    %vm45 = vcmask 261120
    %v47 = vsel %vm45, %v34, 0
    %v50 = vsel %vm45, %v35, 0
    %52 = vmatprep.subr.mxu0 0.0
    %53 = vmatpush1.msra.mxu0 %v36
    %54 = vmatprep.subr.mxu0 0.0
    %55 = vmatpush1.msra.mxu0 %v37
    %56 = vmatprep.subr.mxu0 0.0
    %57 = vmatpush1.msra.mxu0 %v38
    %58 = vmatprep.subr.mxu0 0.0
    %59 = vmatpush1.msra.mxu0 %v39
    %60 = vmatprep.subr.mxu0 0.0
    %61 = vmatpush1.msra.mxu0 0.0
    %62 = vmatprep.subr.mxu0 0.0
    %63 = vmatpush1.msra.mxu0 0.0
    %64 = vmatprep.subr.mxu0 0.0
    %65 = vmatpush1.msra.mxu0 0.0
    %66 = vmatprep.subr.mxu0 0.0
    %67 = vmatpush1.msra.mxu0 0.0
    %68 = vmatprep.subr.mxu0 0.0
    %69 = vmatpush1.msra.mxu0 0.0
    %70 = vmatprep.subr.mxu0 0.0
    %71 = vmatpush1.msra.mxu0 0.0
    %72 = vmatprep.subr.mxu0 0.0
    %73 = vmatpush1.msra.mxu0 0.0
    %74 = vmatprep.subr.mxu0 0.0
    %75 = vmatpush1.msra.mxu0 0.0
    %76 = vmatprep.subr.mxu0 0.0
    %77 = vmatpush1.msra.mxu0 0.0
    %78 = vmatprep.subr.mxu0 0.0
    %79 = vmatpush1.msra.mxu0 0.0
    %80 = vmatprep.subr.mxu0 0.0
    %81 = vmatpush1.msra.mxu0 0.0
    %82 = vmatprep.subr.mxu0 0.0
    %83 = vmatpush1.msra.mxu0 0.0
    %84 = vmatprep.subr.mxu0 0.0
    %85 = vmatpush1.msra.mxu0 0.0
    %86 = vmatprep.subr.mxu0 0.0
    %87 = vmatpush1.msra.mxu0 0.0
    %88 = vmatprep.subr.mxu0 0.0
    %89 = vmatpush1.msra.mxu0 0.0
    %90 = vmatprep.subr.mxu0 0.0
    %91 = vmatpush1.msra.mxu0 0.0
    %92 = vmatprep.subr.mxu0 0.0
    %93 = vmatpush1.msra.mxu0 0.0
    %94 = vmatprep.subr.mxu0 0.0
    %95 = vmatpush1.msra.mxu0 0.0
    %96 = vmatprep.subr.mxu0 0.0
    %97 = vmatpush1.msra.mxu0 0.0
    %98 = vmatprep.subr.mxu0 0.0
    %99 = vmatpush1.msra.mxu0 0.0
    %100 = vmatprep.subr.mxu0 0.0
    %101 = vmatpush1.msra.mxu0 0.0
    %102 = vmatprep.subr.mxu0 0.0
    %103 = vmatpush1.msra.mxu0 0.0
    %104 = vmatprep.subr.mxu0 0.0
    %105 = vmatpush1.msra.mxu0 0.0
    %106 = vmatprep.subr.mxu0 0.0
    %107 = vmatpush1.msra.mxu0 0.0
    %108 = vmatprep.subr.mxu0 0.0
    %109 = vmatpush1.msra.mxu0 0.0
    %110 = vmatprep.subr.mxu0 0.0
    %111 = vmatpush1.msra.mxu0 0.0
    %112 = vmatprep.subr.mxu0 0.0
    %113 = vmatpush1.msra.mxu0 0.0
    %114 = vmatprep.subr.mxu0 0.0
    %115 = vmatpush1.msra.mxu0 0.0
    %116 = vmatprep.mubr.f32.mxu0 0.0
    %117 = vmatmul.mubr.f32.gmra.mrb[0].mxu0 %v47
    %v118 = vpop.f32.mrb[0].mxu0
    %v119 = vadd.f32 %v44, %v118
    %v120 = vpop.f32.mrb[0].mxu0
    %121 = vmatprep.mubr.f32.mxu0 0.0
    %122 = vmatmul.mubr.f32.gmra.mrb[0].mxu0 %v50
    %v123 = vpop.f32.mrb[0].mxu0
    %v124 = vadd.f32 %v44, %v123
    %v125 = vpop.f32.mrb[0].mxu0
    %126 = vdwg.mxu0
    %v127 = vmul.f32 %v119, 0.35355338
    %v128 = vmul.f32 %v124, 0.35355338
    %v129 = vld [vmem:[%s3] sm:$0xff]
    %v130 = vld [vmem:[%s3 + $0x8] sm:$0xff]
    %v131 = vld [vmem:[%s3 + $0x10] sm:$0xff]
    %v132 = vld [vmem:[%s3 + $0x18] sm:$0xff]
    %v133 = vld [vmem:[%s7 + $0x2] sm:$0x1]
    %v134 = vlaneseq
    %v135 = vshrl.u32 %v134, 7
    %v136 = vsub.s32 0, %v135
    %v137 = vrot.slane %v133, %v136
    %v139 = vsel %vm45, %v30, 0
    %v142 = vsel %vm45, %v31, 0
    %144 = vmatprep.subr.mxu0 0.0
    %145 = vmatpush1.msra.mxu0 %v129
    %146 = vmatprep.subr.mxu0 0.0
    %147 = vmatpush1.msra.mxu0 %v130
    %148 = vmatprep.subr.mxu0 0.0
    %149 = vmatpush1.msra.mxu0 %v131
    %150 = vmatprep.subr.mxu0 0.0
    %151 = vmatpush1.msra.mxu0 %v132
    %152 = vmatprep.subr.mxu0 0.0
    %153 = vmatpush1.msra.mxu0 0.0
    %154 = vmatprep.subr.mxu0 0.0
    %155 = vmatpush1.msra.mxu0 0.0
    %156 = vmatprep.subr.mxu0 0.0
    %157 = vmatpush1.msra.mxu0 0.0
    %158 = vmatprep.subr.mxu0 0.0
    %159 = vmatpush1.msra.mxu0 0.0
    %160 = vmatprep.subr.mxu0 0.0
    %161 = vmatpush1.msra.mxu0 0.0
    %162 = vmatprep.subr.mxu0 0.0
    %163 = vmatpush1.msra.mxu0 0.0
    %164 = vmatprep.subr.mxu0 0.0
    %165 = vmatpush1.msra.mxu0 0.0
    %166 = vmatprep.subr.mxu0 0.0
    %167 = vmatpush1.msra.mxu0 0.0
    %168 = vmatprep.subr.mxu0 0.0
    %169 = vmatpush1.msra.mxu0 0.0
    %170 = vmatprep.subr.mxu0 0.0
    %171 = vmatpush1.msra.mxu0 0.0
    %172 = vmatprep.subr.mxu0 0.0
    %173 = vmatpush1.msra.mxu0 0.0
    %174 = vmatprep.subr.mxu0 0.0
    %175 = vmatpush1.msra.mxu0 0.0
    %176 = vmatprep.subr.mxu0 0.0
    %177 = vmatpush1.msra.mxu0 0.0
    %178 = vmatprep.subr.mxu0 0.0
    %179 = vmatpush1.msra.mxu0 0.0
    %180 = vmatprep.subr.mxu0 0.0
    %181 = vmatpush1.msra.mxu0 0.0
    %182 = vmatprep.subr.mxu0 0.0
    %183 = vmatpush1.msra.mxu0 0.0
    %184 = vmatprep.subr.mxu0 0.0
    %185 = vmatpush1.msra.mxu0 0.0
    %186 = vmatprep.subr.mxu0 0.0
    %187 = vmatpush1.msra.mxu0 0.0
    %188 = vmatprep.subr.mxu0 0.0
    %189 = vmatpush1.msra.mxu0 0.0
    %190 = vmatprep.subr.mxu0 0.0
    %191 = vmatpush1.msra.mxu0 0.0
    %192 = vmatprep.subr.mxu0 0.0
    %193 = vmatpush1.msra.mxu0 0.0
    %194 = vmatprep.subr.mxu0 0.0
    %195 = vmatpush1.msra.mxu0 0.0
    %196 = vmatprep.subr.mxu0 0.0
    %197 = vmatpush1.msra.mxu0 0.0
    %198 = vmatprep.subr.mxu0 0.0
    %199 = vmatpush1.msra.mxu0 0.0
    %200 = vmatprep.subr.mxu0 0.0
    %201 = vmatpush1.msra.mxu0 0.0
    %202 = vmatprep.subr.mxu0 0.0
    %203 = vmatpush1.msra.mxu0 0.0
    %204 = vmatprep.subr.mxu0 0.0
    %205 = vmatpush1.msra.mxu0 0.0
    %206 = vmatprep.subr.mxu0 0.0
    %207 = vmatpush1.msra.mxu0 0.0
    %208 = vmatprep.mubr.f32.mxu0 0.0
    %209 = vmatmul.mubr.f32.gmra.mrb[0].mxu0 %v139
    %v210 = vpop.f32.mrb[0].mxu0
    %v211 = vadd.f32 %v137, %v210
    %v212 = vpop.f32.mrb[0].mxu0
    %213 = vmatprep.mubr.f32.mxu0 0.0
    %214 = vmatmul.mubr.f32.gmra.mrb[0].mxu0 %v142
    %v215 = vpop.f32.mrb[0].mxu0
    %v216 = vadd.f32 %v137, %v215
    %v217 = vpop.f32.mrb[0].mxu0
    %218 = vdwg.mxu0
    %221 = vrot.lane.b32.xlu0 %v127, 120
    %v222 = vpop.permute.xlu0 %221
    %223 = vrot.lane.b32.xlu0 %v128, 120
    %v224 = vpop.permute.xlu0 %223
    %225 = vrot.lane.b32.xlu0 %v127, 112
    %v226 = vpop.permute.xlu0 %225
    %227 = vrot.lane.b32.xlu0 %v128, 112
    %v228 = vpop.permute.xlu0 %227
    %229 = vrot.lane.b32.xlu0 %v127, 104
    %v230 = vpop.permute.xlu0 %229
    %231 = vrot.lane.b32.xlu0 %v128, 104
    %v232 = vpop.permute.xlu0 %231
    %235 = vrot.lane.b32.xlu0 %v119, 120
    %v236 = vpop.permute.xlu0 %235
    %237 = vrot.lane.b32.xlu0 %v124, 120
    %v238 = vpop.permute.xlu0 %237
    %239 = vrot.lane.b32.xlu0 %v119, 112
    %v240 = vpop.permute.xlu0 %239
    %241 = vrot.lane.b32.xlu0 %v124, 112
    %v242 = vpop.permute.xlu0 %241
    %243 = vrot.lane.b32.xlu0 %v119, 104
    %v244 = vpop.permute.xlu0 %243
    %245 = vrot.lane.b32.xlu0 %v124, 104
    %v246 = vpop.permute.xlu0 %245
    %249 = vrot.lane.b32.xlu0 %v211, 120
    %v250 = vpop.permute.xlu0 %249
    %251 = vrot.lane.b32.xlu0 %v216, 120
    %v252 = vpop.permute.xlu0 %251
    %255 = vrot.lane.b32.xlu0 %v211, 112
    %v256 = vpop.permute.xlu0 %255
    %257 = vrot.lane.b32.xlu0 %v216, 112
    %v258 = vpop.permute.xlu0 %257
    %261 = vrot.lane.b32.xlu0 %v211, 104
    %v262 = vpop.permute.xlu0 %261
    %263 = vrot.lane.b32.xlu0 %v216, 104
    %v264 = vpop.permute.xlu0 %263
    %v267 = vld [vmem:[%s7 + $0x10] sm:$0xff]
    %v268 = vld [vmem:[%s7 + $0x18] sm:$0xff]
    %v269 = vld [vmem:[%s7 + $0x20] sm:$0xff]
    %v270 = vld [vmem:[%s7 + $0x28] sm:$0xff]
    %v271 = vld [vmem:[%s7 + $0x30] sm:$0xff]
    %v272 = vld [vmem:[%s7 + $0x38] sm:$0xff]
    %v273 = vld [vmem:[%s7 + $0x40] sm:$0xff]
    %v274 = vld [vmem:[%s7 + $0x48] sm:$0xff]
    %275 = vrot.lane.b32.xlu0 %v119, 96
    %v276 = vpop.permute.xlu0 %275
    %277 = vrot.lane.b32.xlu0 %v124, 96
    %v278 = vpop.permute.xlu0 %277
    %279 = vrot.lane.b32.xlu0 %v236, 96
    %v280 = vpop.permute.xlu0 %279
    %281 = vrot.lane.b32.xlu0 %v238, 96
    %v282 = vpop.permute.xlu0 %281
    %283 = vrot.lane.b32.xlu0 %v240, 96
    %v284 = vpop.permute.xlu0 %283
    %285 = vrot.lane.b32.xlu0 %v242, 96
    %v286 = vpop.permute.xlu0 %285
    %287 = vrot.lane.b32.xlu0 %v244, 96
    %v288 = vpop.permute.xlu0 %287
    %289 = vrot.lane.b32.xlu0 %v246, 96
    %v290 = vpop.permute.xlu0 %289
    %vm291 = vcmask 64512
    %v292 = vsel %vm291, %v127, 0
    %v294 = vsel %vm291, %v128, 0
    %v296 = vsel %vm291, %v222, 0
    %v298 = vsel %vm291, %v224, 0
    %v300 = vsel %vm291, %v226, 0
    %v302 = vsel %vm291, %v228, 0
    %v304 = vsel %vm291, %v230, 0
    %v306 = vsel %vm291, %v232, 0
    %v308 = vsel %vm291, %v276, 0
    %v310 = vsel %vm291, %v278, 0
    %v312 = vsel %vm291, %v280, 0
    %v314 = vsel %vm291, %v282, 0
    %v316 = vsel %vm291, %v284, 0
    %v318 = vsel %vm291, %v286, 0
    %v320 = vsel %vm291, %v288, 0
    %v322 = vsel %vm291, %v290, 0
    %324 = vmatprep.subr.mxu0 0.0
    %325 = vmatpush1.xpose.msra.mxu0 %v308
    %326 = vmatprep.subr.mxu0 0.0
    %327 = vmatpush1.xpose.msra.mxu0 %v310
    %328 = vmatprep.subr.mxu0 0.0
    %329 = vmatpush1.xpose.msra.mxu0 %v312
    %330 = vmatprep.subr.mxu0 0.0
    %331 = vmatpush1.xpose.msra.mxu0 %v314
    %332 = vmatprep.subr.mxu0 0.0
    %333 = vmatpush1.xpose.msra.mxu0 %v316
    %334 = vmatprep.subr.mxu0 0.0
    %335 = vmatpush1.xpose.msra.mxu0 %v318
    %336 = vmatprep.subr.mxu0 0.0
    %337 = vmatpush1.xpose.msra.mxu0 %v320
    %338 = vmatprep.subr.mxu0 0.0
    %339 = vmatpush1.xpose.msra.mxu0 %v322
    %340 = vmatprep.subr.mxu0 0.0
    %341 = vmatpush1.xpose.msra.mxu0 0.0
    %342 = vmatprep.subr.mxu0 0.0
    %343 = vmatpush1.xpose.msra.mxu0 0.0
    %344 = vmatprep.subr.mxu0 0.0
    %345 = vmatpush1.xpose.msra.mxu0 0.0
    %346 = vmatprep.subr.mxu0 0.0
    %347 = vmatpush1.xpose.msra.mxu0 0.0
    %348 = vmatprep.subr.mxu0 0.0
    %349 = vmatpush1.xpose.msra.mxu0 0.0
    %350 = vmatprep.subr.mxu0 0.0
    %351 = vmatpush1.xpose.msra.mxu0 0.0
    %352 = vmatprep.subr.mxu0 0.0
    %353 = vmatpush1.xpose.msra.mxu0 0.0
    %354 = vmatprep.subr.mxu0 0.0
    %355 = vmatpush1.xpose.msra.mxu0 0.0
    %356 = vmatprep.subr.mxu0 0.0
    %357 = vmatpush1.xpose.msra.mxu0 0.0
    %358 = vmatprep.subr.mxu0 0.0
    %359 = vmatpush1.xpose.msra.mxu0 0.0
    %360 = vmatprep.subr.mxu0 0.0
    %361 = vmatpush1.xpose.msra.mxu0 0.0
    %362 = vmatprep.subr.mxu0 0.0
    %363 = vmatpush1.xpose.msra.mxu0 0.0
    %364 = vmatprep.subr.mxu0 0.0
    %365 = vmatpush1.xpose.msra.mxu0 0.0
    %366 = vmatprep.subr.mxu0 0.0
    %367 = vmatpush1.xpose.msra.mxu0 0.0
    %368 = vmatprep.subr.mxu0 0.0
    %369 = vmatpush1.xpose.msra.mxu0 0.0
    %370 = vmatprep.subr.mxu0 0.0
    %371 = vmatpush1.xpose.msra.mxu0 0.0
    %372 = vmatprep.subr.mxu0 0.0
    %373 = vmatpush1.xpose.msra.mxu0 0.0
    %374 = vmatprep.subr.mxu0 0.0
    %375 = vmatpush1.xpose.msra.mxu0 0.0
    %376 = vmatprep.subr.mxu0 0.0
    %377 = vmatpush1.xpose.msra.mxu0 0.0
    %378 = vmatprep.subr.mxu0 0.0
    %379 = vmatpush1.xpose.msra.mxu0 0.0
    %380 = vmatprep.subr.mxu0 0.0
    %381 = vmatpush1.xpose.msra.mxu0 0.0
    %382 = vmatprep.subr.mxu0 0.0
    %383 = vmatpush1.xpose.msra.mxu0 0.0
    %384 = vmatprep.subr.mxu0 0.0
    %385 = vmatpush1.xpose.msra.mxu0 0.0
    %386 = vmatprep.subr.mxu0 0.0
    %387 = vmatpush1.xpose.msra.mxu0 0.0
    %388 = vmatprep.mubr.f32.mxu0 0.0
    %389 = vmatmul.mubr.f32.gmra.mrb[0].mxu0 %v292
    %v390 = vpop.f32.mrb[0].mxu0
    %v391 = vadd.f32 %v267, %v390
    %v392 = vpop.f32.mrb[0].mxu0
    %393 = vmatprep.mubr.f32.mxu0 0.0
    %394 = vmatmul.mubr.f32.gmra.mrb[0].mxu0 %v294
    %v395 = vpop.f32.mrb[0].mxu0
    %v396 = vadd.f32 %v268, %v395
    %v397 = vpop.f32.mrb[0].mxu0
    %398 = vmatprep.mubr.f32.mxu0 0.0
    %399 = vmatmul.mubr.f32.gmra.mrb[0].mxu0 %v296
    %v400 = vpop.f32.mrb[0].mxu0
    %v401 = vadd.f32 %v269, %v400
    %v402 = vpop.f32.mrb[0].mxu0
    %403 = vmatprep.mubr.f32.mxu0 0.0
    %404 = vmatmul.mubr.f32.gmra.mrb[0].mxu0 %v298
    %v405 = vpop.f32.mrb[0].mxu0
    %v406 = vadd.f32 %v270, %v405
    %v407 = vpop.f32.mrb[0].mxu0
    %408 = vmatprep.mubr.f32.mxu0 0.0
    %409 = vmatmul.mubr.f32.gmra.mrb[0].mxu0 %v300
    %v410 = vpop.f32.mrb[0].mxu0
    %v411 = vadd.f32 %v271, %v410
    %v412 = vpop.f32.mrb[0].mxu0
    %413 = vmatprep.mubr.f32.mxu0 0.0
    %414 = vmatmul.mubr.f32.gmra.mrb[0].mxu0 %v302
    %v415 = vpop.f32.mrb[0].mxu0
    %v416 = vadd.f32 %v272, %v415
    %v417 = vpop.f32.mrb[0].mxu0
    %418 = vmatprep.mubr.f32.mxu0 0.0
    %419 = vmatmul.mubr.f32.gmra.mrb[0].mxu0 %v304
    %v420 = vpop.f32.mrb[0].mxu0
    %v421 = vadd.f32 %v273, %v420
    %v422 = vpop.f32.mrb[0].mxu0
    %423 = vmatprep.mubr.f32.mxu0 0.0
    %424 = vmatmul.mubr.f32.gmra.mrb[0].mxu0 %v306
    %v425 = vpop.f32.mrb[0].mxu0
    %v426 = vadd.f32 %v274, %v425
    %v427 = vpop.f32.mrb[0].mxu0
    %428 = vdwg.mxu0
    %vm429 = vcmask 523264
    %v430 = vsel %vm429, %v391, -inf
    %431 = vmax.xlane.f32.xlu0 %v430
    %v432 = vpop.xlane.xlu0 %431
    %v433 = vsel %vm429, %v396, -inf
    %434 = vmax.xlane.f32.xlu0 %v433
    %v435 = vpop.xlane.xlu0 %434
    %v436 = vsel %vm429, %v401, -inf
    %437 = vmax.xlane.f32.xlu0 %v436
    %v438 = vpop.xlane.xlu0 %437
    %v439 = vsel %vm429, %v406, -inf
    %440 = vmax.xlane.f32.xlu0 %v439
    %v441 = vpop.xlane.xlu0 %440
    %v442 = vsel %vm429, %v411, -inf
    %443 = vmax.xlane.f32.xlu0 %v442
    %v444 = vpop.xlane.xlu0 %443
    %v445 = vsel %vm429, %v416, -inf
    %446 = vmax.xlane.f32.xlu0 %v445
    %v447 = vpop.xlane.xlu0 %446
    %v448 = vsel %vm429, %v421, -inf
    %449 = vmax.xlane.f32.xlu0 %v448
    %v450 = vpop.xlane.xlu0 %449
    %v451 = vsel %vm429, %v426, -inf
    %452 = vmax.xlane.f32.xlu0 %v451
    %v453 = vpop.xlane.xlu0 %452
    %v454 = vsub.f32 %v391, %v432
    %v455 = vsub.f32 %v396, %v435
    %v456 = vsub.f32 %v401, %v438
    %v457 = vsub.f32 %v406, %v441
    %v458 = vsub.f32 %v411, %v444
    %v459 = vsub.f32 %v416, %v447
    %v460 = vsub.f32 %v421, %v450
    %v461 = vsub.f32 %v426, %v453
    %v462 = vmul.f32 %v454, 1.442695
    %v463 = vpow.pop %v462
    %v464 = vmul.f32 %v455, 1.442695
    %v465 = vpow.pop %v464
    %v466 = vmul.f32 %v456, 1.442695
    %v467 = vpow.pop %v466
    %v468 = vmul.f32 %v457, 1.442695
    %v469 = vpow.pop %v468
    %v470 = vmul.f32 %v458, 1.442695
    %v471 = vpow.pop %v470
    %v472 = vmul.f32 %v459, 1.442695
    %v473 = vpow.pop %v472
    %v474 = vmul.f32 %v460, 1.442695
    %v475 = vpow.pop %v474
    %v476 = vmul.f32 %v461, 1.442695
    %v477 = vpow.pop %v476
    %v478 = vsel %vm429, %v463, 0.0
    %479 = vadd.xlane.f32.xlu0 %v478
    %v480 = vpop.xlane.xlu0 %479
    %v481 = vsel %vm429, %v465, 0.0
    %482 = vadd.xlane.f32.xlu0 %v481
    %v483 = vpop.xlane.xlu0 %482
    %v484 = vsel %vm429, %v467, 0.0
    %485 = vadd.xlane.f32.xlu0 %v484
    %v486 = vpop.xlane.xlu0 %485
    %v487 = vsel %vm429, %v469, 0.0
    %488 = vadd.xlane.f32.xlu0 %v487
    %v489 = vpop.xlane.xlu0 %488
    %v490 = vsel %vm429, %v471, 0.0
    %491 = vadd.xlane.f32.xlu0 %v490
    %v492 = vpop.xlane.xlu0 %491
    %v493 = vsel %vm429, %v473, 0.0
    %494 = vadd.xlane.f32.xlu0 %v493
    %v495 = vpop.xlane.xlu0 %494
    %v496 = vsel %vm429, %v475, 0.0
    %497 = vadd.xlane.f32.xlu0 %v496
    %v498 = vpop.xlane.xlu0 %497
    %v499 = vsel %vm429, %v477, 0.0
    %500 = vadd.xlane.f32.xlu0 %v499
    %v501 = vpop.xlane.xlu0 %500
    %v502 = vrcp.pop %v480
    %v503 = vrcp.pop %v483
    %v504 = vrcp.pop %v486
    %v505 = vrcp.pop %v489
    %v506 = vrcp.pop %v492
    %v507 = vrcp.pop %v495
    %v508 = vrcp.pop %v498
    %v509 = vrcp.pop %v501
    %v510 = vmul.f32 %v463, %v502
    %v511 = vmul.f32 %v465, %v503
    %v512 = vmul.f32 %v467, %v504
    %v513 = vmul.f32 %v469, %v505
    %v514 = vmul.f32 %v471, %v506
    %v515 = vmul.f32 %v473, %v507
    %v516 = vmul.f32 %v475, %v508
    %v517 = vmul.f32 %v477, %v509
    %v519 = vsel %vm429, %v510, 0
    %v522 = vsel %vm429, %v511, 0
    %v525 = vsel %vm429, %v512, 0
    %v528 = vsel %vm429, %v513, 0
    %v531 = vsel %vm429, %v514, 0
    %v534 = vsel %vm429, %v515, 0
    %v537 = vsel %vm429, %v516, 0
    %v540 = vsel %vm429, %v517, 0
    %542 = vmatprep.subr.mxu0 0.0
    %543 = vmatpush1.msra.mxu0 %v211
    %544 = vmatprep.subr.mxu0 0.0
    %545 = vmatpush1.msra.mxu0 %v216
    %546 = vmatprep.subr.mxu0 0.0
    %547 = vmatpush1.msra.mxu0 %v250
    %548 = vmatprep.subr.mxu0 0.0
    %549 = vmatpush1.msra.mxu0 %v252
    %550 = vmatprep.subr.mxu0 0.0
    %551 = vmatpush1.msra.mxu0 %v256
    %552 = vmatprep.subr.mxu0 0.0
    %553 = vmatpush1.msra.mxu0 %v258
    %554 = vmatprep.subr.mxu0 0.0
    %555 = vmatpush1.msra.mxu0 %v262
    %556 = vmatprep.subr.mxu0 0.0
    %557 = vmatpush1.msra.mxu0 %v264
    %558 = vmatprep.subr.mxu0 0.0
    %559 = vmatpush1.msra.mxu0 0.0
    %560 = vmatprep.subr.mxu0 0.0
    %561 = vmatpush1.msra.mxu0 0.0
    %562 = vmatprep.subr.mxu0 0.0
    %563 = vmatpush1.msra.mxu0 0.0
    %564 = vmatprep.subr.mxu0 0.0
    %565 = vmatpush1.msra.mxu0 0.0
    %566 = vmatprep.subr.mxu0 0.0
    %567 = vmatpush1.msra.mxu0 0.0
    %568 = vmatprep.subr.mxu0 0.0
    %569 = vmatpush1.msra.mxu0 0.0
    %570 = vmatprep.subr.mxu0 0.0
    %571 = vmatpush1.msra.mxu0 0.0
    %572 = vmatprep.subr.mxu0 0.0
    %573 = vmatpush1.msra.mxu0 0.0
    %574 = vmatprep.subr.mxu0 0.0
    %575 = vmatpush1.msra.mxu0 0.0
    %576 = vmatprep.subr.mxu0 0.0
    %577 = vmatpush1.msra.mxu0 0.0
    %578 = vmatprep.subr.mxu0 0.0
    %579 = vmatpush1.msra.mxu0 0.0
    %580 = vmatprep.subr.mxu0 0.0
    %581 = vmatpush1.msra.mxu0 0.0
    %582 = vmatprep.subr.mxu0 0.0
    %583 = vmatpush1.msra.mxu0 0.0
    %584 = vmatprep.subr.mxu0 0.0
    %585 = vmatpush1.msra.mxu0 0.0
    %586 = vmatprep.subr.mxu0 0.0
    %587 = vmatpush1.msra.mxu0 0.0
    %588 = vmatprep.subr.mxu0 0.0
    %589 = vmatpush1.msra.mxu0 0.0
    %590 = vmatprep.subr.mxu0 0.0
    %591 = vmatpush1.msra.mxu0 0.0
    %592 = vmatprep.subr.mxu0 0.0
    %593 = vmatpush1.msra.mxu0 0.0
    %594 = vmatprep.subr.mxu0 0.0
    %595 = vmatpush1.msra.mxu0 0.0
    %596 = vmatprep.subr.mxu0 0.0
    %597 = vmatpush1.msra.mxu0 0.0
    %598 = vmatprep.subr.mxu0 0.0
    %599 = vmatpush1.msra.mxu0 0.0
    %600 = vmatprep.subr.mxu0 0.0
    %601 = vmatpush1.msra.mxu0 0.0
    %602 = vmatprep.subr.mxu0 0.0
    %603 = vmatpush1.msra.mxu0 0.0
    %604 = vmatprep.subr.mxu0 0.0
    %605 = vmatpush1.msra.mxu0 0.0
    %606 = vmatprep.mubr.f32.mxu0 0.0
    %607 = vmatmul.mubr.f32.gmra.mrb[0].mxu0 %v519
    %v608 = vpop.f32.mrb[0].mxu0
    %v609 = vadd.f32 0.0, %v608
    %v610 = vpop.f32.mrb[0].mxu0
    %611 = vmatprep.mubr.f32.mxu0 0.0
    %612 = vmatmul.mubr.f32.gmra.mrb[0].mxu0 %v522
    %v613 = vpop.f32.mrb[0].mxu0
    %v614 = vadd.f32 0.0, %v613
    %v615 = vpop.f32.mrb[0].mxu0
    %616 = vmatprep.mubr.f32.mxu0 0.0
    %617 = vmatmul.mubr.f32.gmra.mrb[0].mxu0 %v525
    %v618 = vpop.f32.mrb[0].mxu0
    %v619 = vadd.f32 0.0, %v618
    %v620 = vpop.f32.mrb[0].mxu0
    %621 = vmatprep.mubr.f32.mxu0 0.0
    %622 = vmatmul.mubr.f32.gmra.mrb[0].mxu0 %v528
    %v623 = vpop.f32.mrb[0].mxu0
    %v624 = vadd.f32 0.0, %v623
    %v625 = vpop.f32.mrb[0].mxu0
    %626 = vmatprep.mubr.f32.mxu0 0.0
    %627 = vmatmul.mubr.f32.gmra.mrb[0].mxu0 %v531
    %v628 = vpop.f32.mrb[0].mxu0
    %v629 = vadd.f32 0.0, %v628
    %v630 = vpop.f32.mrb[0].mxu0
    %631 = vmatprep.mubr.f32.mxu0 0.0
    %632 = vmatmul.mubr.f32.gmra.mrb[0].mxu0 %v534
    %v633 = vpop.f32.mrb[0].mxu0
    %v634 = vadd.f32 0.0, %v633
    %v635 = vpop.f32.mrb[0].mxu0
    %636 = vmatprep.mubr.f32.mxu0 0.0
    %637 = vmatmul.mubr.f32.gmra.mrb[0].mxu0 %v537
    %v638 = vpop.f32.mrb[0].mxu0
    %v639 = vadd.f32 0.0, %v638
    %v640 = vpop.f32.mrb[0].mxu0
    %641 = vmatprep.mubr.f32.mxu0 0.0
    %642 = vmatmul.mubr.f32.gmra.mrb[0].mxu0 %v540
    %v643 = vpop.f32.mrb[0].mxu0
    %v644 = vadd.f32 0.0, %v643
    %v645 = vpop.f32.mrb[0].mxu0
    %646 = vdwg.mxu0
    %649 = vrot.lane.b32.xlu0 %v619, 8
    %v650 = vpop.permute.xlu0 %649
    %651 = vrot.lane.b32.xlu0 %v624, 8
    %v652 = vpop.permute.xlu0 %651
    %657 = vrot.lane.b32.xlu0 %v629, 16
    %v658 = vpop.permute.xlu0 %657
    %659 = vrot.lane.b32.xlu0 %v634, 16
    %v660 = vpop.permute.xlu0 %659
    %665 = vrot.lane.b32.xlu0 %v639, 24
    %v666 = vpop.permute.xlu0 %665
    %667 = vrot.lane.b32.xlu0 %v644, 24
    %v668 = vpop.permute.xlu0 %667
    %v671 = vsel %vm291, %v609, %v650
    %v672 = vsel %vm291, %v614, %v652
    %vm673 = vcmask 130048
    %v674 = vsel %vm673, %v671, %v658
    %v675 = vsel %vm673, %v672, %v660
    %vm676 = vcmask 195584
    %v677 = vsel %vm676, %v674, %v666
    %v678 = vsel %vm676, %v675, %v668
    %v679 = vld [vmem:[%s4] sm:$0xff]
    %v680 = vld [vmem:[%s4 + $0x8] sm:$0xff]
    %v681 = vld [vmem:[%s4 + $0x10] sm:$0xff]
    %v682 = vld [vmem:[%s4 + $0x18] sm:$0xff]
    %v683 = vld [vmem:[%s7 + $0x3] sm:$0x1]
    %v684 = vlaneseq
    %v685 = vshrl.u32 %v684, 7
    %v686 = vsub.s32 0, %v685
    %v687 = vrot.slane %v683, %v686
    %v689 = vsel %vm45, %v677, 0
    %v692 = vsel %vm45, %v678, 0
    %694 = vmatprep.subr.mxu0 0.0
    %695 = vmatpush1.msra.mxu0 %v679
    %696 = vmatprep.subr.mxu0 0.0
    %697 = vmatpush1.msra.mxu0 %v680
    %698 = vmatprep.subr.mxu0 0.0
    %699 = vmatpush1.msra.mxu0 %v681
    %700 = vmatprep.subr.mxu0 0.0
    %701 = vmatpush1.msra.mxu0 %v682
    %702 = vmatprep.subr.mxu0 0.0
    %703 = vmatpush1.msra.mxu0 0.0
    %704 = vmatprep.subr.mxu0 0.0
    %705 = vmatpush1.msra.mxu0 0.0
    %706 = vmatprep.subr.mxu0 0.0
    %707 = vmatpush1.msra.mxu0 0.0
    %708 = vmatprep.subr.mxu0 0.0
    %709 = vmatpush1.msra.mxu0 0.0
    %710 = vmatprep.subr.mxu0 0.0
    %711 = vmatpush1.msra.mxu0 0.0
    %712 = vmatprep.subr.mxu0 0.0
    %713 = vmatpush1.msra.mxu0 0.0
    %714 = vmatprep.subr.mxu0 0.0
    %715 = vmatpush1.msra.mxu0 0.0
    %716 = vmatprep.subr.mxu0 0.0
    %717 = vmatpush1.msra.mxu0 0.0
    %718 = vmatprep.subr.mxu0 0.0
    %719 = vmatpush1.msra.mxu0 0.0
    %720 = vmatprep.subr.mxu0 0.0
    %721 = vmatpush1.msra.mxu0 0.0
    %722 = vmatprep.subr.mxu0 0.0
    %723 = vmatpush1.msra.mxu0 0.0
    %724 = vmatprep.subr.mxu0 0.0
    %725 = vmatpush1.msra.mxu0 0.0
    %726 = vmatprep.subr.mxu0 0.0
    %727 = vmatpush1.msra.mxu0 0.0
    %728 = vmatprep.subr.mxu0 0.0
    %729 = vmatpush1.msra.mxu0 0.0
    %730 = vmatprep.subr.mxu0 0.0
    %731 = vmatpush1.msra.mxu0 0.0
    %732 = vmatprep.subr.mxu0 0.0
    %733 = vmatpush1.msra.mxu0 0.0
    %734 = vmatprep.subr.mxu0 0.0
    %735 = vmatpush1.msra.mxu0 0.0
    %736 = vmatprep.subr.mxu0 0.0
    %737 = vmatpush1.msra.mxu0 0.0
    %738 = vmatprep.subr.mxu0 0.0
    %739 = vmatpush1.msra.mxu0 0.0
    %740 = vmatprep.subr.mxu0 0.0
    %741 = vmatpush1.msra.mxu0 0.0
    %742 = vmatprep.subr.mxu0 0.0
    %743 = vmatpush1.msra.mxu0 0.0
    %744 = vmatprep.subr.mxu0 0.0
    %745 = vmatpush1.msra.mxu0 0.0
    %746 = vmatprep.subr.mxu0 0.0
    %747 = vmatpush1.msra.mxu0 0.0
    %748 = vmatprep.subr.mxu0 0.0
    %749 = vmatpush1.msra.mxu0 0.0
    %750 = vmatprep.subr.mxu0 0.0
    %751 = vmatpush1.msra.mxu0 0.0
    %752 = vmatprep.subr.mxu0 0.0
    %753 = vmatpush1.msra.mxu0 0.0
    %754 = vmatprep.subr.mxu0 0.0
    %755 = vmatpush1.msra.mxu0 0.0
    %756 = vmatprep.subr.mxu0 0.0
    %757 = vmatpush1.msra.mxu0 0.0
    %758 = vmatprep.mubr.f32.mxu0 0.0
    %759 = vmatmul.mubr.f32.gmra.mrb[0].mxu0 %v689
    %v760 = vpop.f32.mrb[0].mxu0
    %v761 = vadd.f32 %v687, %v760
    %v762 = vpop.f32.mrb[0].mxu0
    %763 = vmatprep.mubr.f32.mxu0 0.0
    %764 = vmatmul.mubr.f32.gmra.mrb[0].mxu0 %v692
    %v765 = vpop.f32.mrb[0].mxu0
    %v766 = vadd.f32 %v687, %v765
    %v767 = vpop.f32.mrb[0].mxu0
    %768 = vdwg.mxu0
    %v769 = vadd.f32 %v30, %v761
    %v770 = vadd.f32 %v31, %v766
    %v771 = vld [vmem:[%s7 + $0x5] sm:$0x1]
    %v772 = vld [vmem:[%s7 + $0x6] sm:$0x1]
    %v773 = vsel %vm45, %v769, 0.0
    %774 = vadd.xlane.f32.xlu0 %v773
    %v775 = vpop.xlane.xlu0 %774
    %v776 = vsel %vm45, %v770, 0.0
    %777 = vadd.xlane.f32.xlu0 %v776
    %v778 = vpop.xlane.xlu0 %777
    %v779 = vrcp.pop 32.0
    %v780 = vmul.f32 %v775, %v779
    %v781 = vmul.f32 %v778, %v779
    %v782 = vsub.f32 %v769, %v780
    %v783 = vsub.f32 %v770, %v781
    %v784 = vmul.f32 %v782, %v782
    %v785 = vmul.f32 %v783, %v783
    %v786 = vsel %vm45, %v784, 0.0
    %787 = vadd.xlane.f32.xlu0 %v786
    %v788 = vpop.xlane.xlu0 %787
    %v789 = vsel %vm45, %v785, 0.0
    %790 = vadd.xlane.f32.xlu0 %v789
    %v791 = vpop.xlane.xlu0 %790
    %v792 = vmul.f32 %v788, %v779
    %v793 = vmul.f32 %v791, %v779
    %v794 = vadd.f32 %v792, 1e-05
    %v795 = vadd.f32 %v793, 1e-05
    %v796 = vrsqrt.pop %v794
    %v797 = vrsqrt.pop %v795
    %v798 = vmul.f32 %v782, %v796
    %v799 = vmul.f32 %v783, %v797
    %v800 = vlaneseq
    %v801 = vshrl.u32 %v800, 7
    %v802 = vsub.s32 0, %v801
    %v803 = vrot.slane %v771, %v802
    %v804 = vmul.f32 %v798, %v803
    %v805 = vmul.f32 %v799, %v803
    %v806 = vlaneseq
    %v807 = vshrl.u32 %v806, 7
    %v808 = vsub.s32 0, %v807
    %v809 = vrot.slane %v772, %v808
    %v810 = vadd.f32 %v804, %v809
    %v811 = vadd.f32 %v805, %v809
    %v812 = vld [vmem:[%s5] sm:$0xff]
    %v813 = vld [vmem:[%s5 + $0x8] sm:$0xff]
    %v814 = vld [vmem:[%s5 + $0x10] sm:$0xff]
    %v815 = vld [vmem:[%s5 + $0x18] sm:$0xff]
    %v816 = vld [vmem:[%s7 + $0x1] sm:$0x1]
    %v817 = vlaneseq
    %v818 = vshrl.u32 %v817, 7
    %v819 = vsub.s32 0, %v818
    %v820 = vrot.slane %v816, %v819
    %v822 = vsel %vm45, %v810, 0
    %v825 = vsel %vm45, %v811, 0
    %827 = vmatprep.subr.mxu0 0.0
    %828 = vmatpush1.msra.mxu0 %v812
    %829 = vmatprep.subr.mxu0 0.0
    %830 = vmatpush1.msra.mxu0 %v813
    %831 = vmatprep.subr.mxu0 0.0
    %832 = vmatpush1.msra.mxu0 %v814
    %833 = vmatprep.subr.mxu0 0.0
    %834 = vmatpush1.msra.mxu0 %v815
    %835 = vmatprep.subr.mxu0 0.0
    %836 = vmatpush1.msra.mxu0 0.0
    %837 = vmatprep.subr.mxu0 0.0
    %838 = vmatpush1.msra.mxu0 0.0
    %839 = vmatprep.subr.mxu0 0.0
    %840 = vmatpush1.msra.mxu0 0.0
    %841 = vmatprep.subr.mxu0 0.0
    %842 = vmatpush1.msra.mxu0 0.0
    %843 = vmatprep.subr.mxu0 0.0
    %844 = vmatpush1.msra.mxu0 0.0
    %845 = vmatprep.subr.mxu0 0.0
    %846 = vmatpush1.msra.mxu0 0.0
    %847 = vmatprep.subr.mxu0 0.0
    %848 = vmatpush1.msra.mxu0 0.0
    %849 = vmatprep.subr.mxu0 0.0
    %850 = vmatpush1.msra.mxu0 0.0
    %851 = vmatprep.subr.mxu0 0.0
    %852 = vmatpush1.msra.mxu0 0.0
    %853 = vmatprep.subr.mxu0 0.0
    %854 = vmatpush1.msra.mxu0 0.0
    %855 = vmatprep.subr.mxu0 0.0
    %856 = vmatpush1.msra.mxu0 0.0
    %857 = vmatprep.subr.mxu0 0.0
    %858 = vmatpush1.msra.mxu0 0.0
    %859 = vmatprep.subr.mxu0 0.0
    %860 = vmatpush1.msra.mxu0 0.0
    %861 = vmatprep.subr.mxu0 0.0
    %862 = vmatpush1.msra.mxu0 0.0
    %863 = vmatprep.subr.mxu0 0.0
    %864 = vmatpush1.msra.mxu0 0.0
    %865 = vmatprep.subr.mxu0 0.0
    %866 = vmatpush1.msra.mxu0 0.0
    %867 = vmatprep.subr.mxu0 0.0
    %868 = vmatpush1.msra.mxu0 0.0
    %869 = vmatprep.subr.mxu0 0.0
    %870 = vmatpush1.msra.mxu0 0.0
    %871 = vmatprep.subr.mxu0 0.0
    %872 = vmatpush1.msra.mxu0 0.0
    %873 = vmatprep.subr.mxu0 0.0
    %874 = vmatpush1.msra.mxu0 0.0
    %875 = vmatprep.subr.mxu0 0.0
    %876 = vmatpush1.msra.mxu0 0.0
    %877 = vmatprep.subr.mxu0 0.0
    %878 = vmatpush1.msra.mxu0 0.0
    %879 = vmatprep.subr.mxu0 0.0
    %880 = vmatpush1.msra.mxu0 0.0
    %881 = vmatprep.subr.mxu0 0.0
    %882 = vmatpush1.msra.mxu0 0.0
    %883 = vmatprep.subr.mxu0 0.0
    %884 = vmatpush1.msra.mxu0 0.0
    %885 = vmatprep.subr.mxu0 0.0
    %886 = vmatpush1.msra.mxu0 0.0
    %887 = vmatprep.subr.mxu0 0.0
    %888 = vmatpush1.msra.mxu0 0.0
    %889 = vmatprep.subr.mxu0 0.0
    %890 = vmatpush1.msra.mxu0 0.0
    %891 = vmatprep.mubr.f32.mxu0 0.0
    %892 = vmatmul.mubr.f32.gmra.mrb[0].mxu0 %v822
    %v893 = vpop.f32.mrb[0].mxu0
    %v894 = vadd.f32 %v820, %v893
    %v895 = vpop.f32.mrb[0].mxu0
    %896 = vmatprep.mubr.f32.mxu0 0.0
    %897 = vmatmul.mubr.f32.gmra.mrb[0].mxu0 %v825
    %v898 = vpop.f32.mrb[0].mxu0
    %v899 = vadd.f32 %v820, %v898
    %v900 = vpop.f32.mrb[0].mxu0
    %901 = vdwg.mxu0
    %v902 = vmax.f32 %v894, 0.0
    %v903 = vmax.f32 %v899, 0.0
    %v904 = vld [vmem:[%s6] sm:$0xff]
    %v905 = vld [vmem:[%s6 + $0x8] sm:$0xff]
    %v906 = vld [vmem:[%s6 + $0x10] sm:$0xff]
    %v907 = vld [vmem:[%s6 + $0x18] sm:$0xff]
    %v908 = vld [vmem:[%s6 + $0x20] sm:$0xff]
    %v909 = vld [vmem:[%s6 + $0x28] sm:$0xff]
    %v910 = vld [vmem:[%s6 + $0x30] sm:$0xff]
    %v911 = vld [vmem:[%s6 + $0x38] sm:$0xff]
    %v912 = vld [vmem:[%s7 + $0x4] sm:$0x1]
    %v913 = vlaneseq
    %v914 = vshrl.u32 %v913, 7
    %v915 = vsub.s32 0, %v914
    %v916 = vrot.slane %v912, %v915
    %v918 = vsel %vm429, %v902, 0
    %v921 = vsel %vm429, %v903, 0
    %923 = vmatprep.subr.mxu0 0.0
    %924 = vmatpush1.msra.mxu0 %v904
    %925 = vmatprep.subr.mxu0 0.0
    %926 = vmatpush1.msra.mxu0 %v905
    %927 = vmatprep.subr.mxu0 0.0
    %928 = vmatpush1.msra.mxu0 %v906
    %929 = vmatprep.subr.mxu0 0.0
    %930 = vmatpush1.msra.mxu0 %v907
    %931 = vmatprep.subr.mxu0 0.0
    %932 = vmatpush1.msra.mxu0 %v908
    %933 = vmatprep.subr.mxu0 0.0
    %934 = vmatpush1.msra.mxu0 %v909
    %935 = vmatprep.subr.mxu0 0.0
    %936 = vmatpush1.msra.mxu0 %v910
    %937 = vmatprep.subr.mxu0 0.0
    %938 = vmatpush1.msra.mxu0 %v911
    %939 = vmatprep.subr.mxu0 0.0
    %940 = vmatpush1.msra.mxu0 0.0
    %941 = vmatprep.subr.mxu0 0.0
    %942 = vmatpush1.msra.mxu0 0.0
    %943 = vmatprep.subr.mxu0 0.0
    %944 = vmatpush1.msra.mxu0 0.0
    %945 = vmatprep.subr.mxu0 0.0
    %946 = vmatpush1.msra.mxu0 0.0
    %947 = vmatprep.subr.mxu0 0.0
    %948 = vmatpush1.msra.mxu0 0.0
    %949 = vmatprep.subr.mxu0 0.0
    %950 = vmatpush1.msra.mxu0 0.0
    %951 = vmatprep.subr.mxu0 0.0
    %952 = vmatpush1.msra.mxu0 0.0
    %953 = vmatprep.subr.mxu0 0.0
    %954 = vmatpush1.msra.mxu0 0.0
    %955 = vmatprep.subr.mxu0 0.0
    %956 = vmatpush1.msra.mxu0 0.0
    %957 = vmatprep.subr.mxu0 0.0
    %958 = vmatpush1.msra.mxu0 0.0
    %959 = vmatprep.subr.mxu0 0.0
    %960 = vmatpush1.msra.mxu0 0.0
    %961 = vmatprep.subr.mxu0 0.0
    %962 = vmatpush1.msra.mxu0 0.0
    %963 = vmatprep.subr.mxu0 0.0
    %964 = vmatpush1.msra.mxu0 0.0
    %965 = vmatprep.subr.mxu0 0.0
    %966 = vmatpush1.msra.mxu0 0.0
    %967 = vmatprep.subr.mxu0 0.0
    %968 = vmatpush1.msra.mxu0 0.0
    %969 = vmatprep.subr.mxu0 0.0
    %970 = vmatpush1.msra.mxu0 0.0
    %971 = vmatprep.subr.mxu0 0.0
    %972 = vmatpush1.msra.mxu0 0.0
    %973 = vmatprep.subr.mxu0 0.0
    %974 = vmatpush1.msra.mxu0 0.0
    %975 = vmatprep.subr.mxu0 0.0
    %976 = vmatpush1.msra.mxu0 0.0
    %977 = vmatprep.subr.mxu0 0.0
    %978 = vmatpush1.msra.mxu0 0.0
    %979 = vmatprep.subr.mxu0 0.0
    %980 = vmatpush1.msra.mxu0 0.0
    %981 = vmatprep.subr.mxu0 0.0
    %982 = vmatpush1.msra.mxu0 0.0
    %983 = vmatprep.subr.mxu0 0.0
    %984 = vmatpush1.msra.mxu0 0.0
    %985 = vmatprep.subr.mxu0 0.0
    %986 = vmatpush1.msra.mxu0 0.0
    %987 = vmatprep.mubr.f32.mxu0 0.0
    %988 = vmatmul.mubr.f32.gmra.mrb[0].mxu0 %v918
    %v989 = vpop.f32.mrb[0].mxu0
    %v990 = vadd.f32 %v916, %v989
    %v991 = vpop.f32.mrb[0].mxu0
    %992 = vmatprep.mubr.f32.mxu0 0.0
    %993 = vmatmul.mubr.f32.gmra.mrb[0].mxu0 %v921
    %v994 = vpop.f32.mrb[0].mxu0
    %v995 = vadd.f32 %v916, %v994
    %v996 = vpop.f32.mrb[0].mxu0
    %997 = vdwg.mxu0
    %v998 = vadd.f32 %v810, %v990
    %v999 = vadd.f32 %v811, %v995
    %v1000 = vld [vmem:[%s7 + $0x7] sm:$0x1]
    %v1001 = vld [vmem:[%s7 + $0x8] sm:$0x1]
    %v1002 = vsel %vm45, %v998, 0.0
    %1003 = vadd.xlane.f32.xlu0 %v1002
    %v1004 = vpop.xlane.xlu0 %1003
    %v1005 = vsel %vm45, %v999, 0.0
    %1006 = vadd.xlane.f32.xlu0 %v1005
    %v1007 = vpop.xlane.xlu0 %1006
    %v1008 = vmul.f32 %v1004, %v779
    %v1009 = vmul.f32 %v1007, %v779
    %v1010 = vsub.f32 %v998, %v1008
    %v1011 = vsub.f32 %v999, %v1009
    %v1012 = vmul.f32 %v1010, %v1010
    %v1013 = vmul.f32 %v1011, %v1011
    %v1014 = vsel %vm45, %v1012, 0.0
    %1015 = vadd.xlane.f32.xlu0 %v1014
    %v1016 = vpop.xlane.xlu0 %1015
    %v1017 = vsel %vm45, %v1013, 0.0
    %1018 = vadd.xlane.f32.xlu0 %v1017
    %v1019 = vpop.xlane.xlu0 %1018
    %v1020 = vmul.f32 %v1016, %v779
    %v1021 = vmul.f32 %v1019, %v779
    %v1022 = vadd.f32 %v1020, 1e-05
    %v1023 = vadd.f32 %v1021, 1e-05
    %v1024 = vrsqrt.pop %v1022
    %v1025 = vrsqrt.pop %v1023
    %v1026 = vmul.f32 %v1010, %v1024
    %v1027 = vmul.f32 %v1011, %v1025
    %v1028 = vlaneseq
    %v1029 = vshrl.u32 %v1028, 7
    %v1030 = vsub.s32 0, %v1029
    %v1031 = vrot.slane %v1000, %v1030
    %v1032 = vmul.f32 %v1026, %v1031
    %v1033 = vmul.f32 %v1027, %v1031
    %v1034 = vlaneseq
    %v1035 = vshrl.u32 %v1034, 7
    %v1036 = vsub.s32 0, %v1035
    %v1037 = vrot.slane %v1001, %v1036
    %v1038 = vadd.f32 %v1032, %v1037
    %v1039 = vadd.f32 %v1033, %v1037
    %1040 = vst.msk [vmem:[#allocation2] sm:$0xff] %vm45, %v1038
    %1041 = vst.msk [vmem:[#allocation2 + $0x8] sm:$0xff] %vm45, %v1039
    // Predicated region
    $region34: #{tpu_custom_call.1} parent=1 // pred_check
      _
    $region35: #{tpu_custom_call.1} parent=1 // pred_check_branch
      %1043 = sbr.rel (0) target = $region37
    $region36: #{tpu_custom_call.1} parent=1 // pred_region
      %s1045 = ssub.s32 256, 256
      %1046 = vsyncadd [#allocation3], %s1045
      %s1047 = sshll.u32 [#allocation2], 4
      %s1048 = int_to_ptr.vmem [resolvable:$true] %s1047
      %1053 = dma.vmem_to_hbm [thread:$0]  %s1048, 256, %s8, [#allocation3], 128, 128, 8
    $region37: #{tpu_custom_call.1} parent=1 // pred_fallthru
      _
    // Predicated region
    $region38: #{tpu_custom_call.1} parent=1 // pred_check
      _
    $region39: #{tpu_custom_call.1} parent=1 // pred_check_branch
      %1055 = sbr.rel (0) target = $region41
    $region40: #{tpu_custom_call.1} parent=1 // pred_region
      %1056 = dma.done [#allocation3], 256
    $region41: #{tpu_custom_call.1} parent=1 // pred_fallthru
      _
    %1057 = vsyncpa [#allocation3], 1

</llo_original>
